<compile_context>
chip_gen: v5e
topology: v5e:2x2
jax: 0.10.0
libtpu: 0.0.40
codegen_flags: <defaults>
</compile_context>

<pallas_src>
import functools
import math

import jax
import jax.numpy as jnp
from jax.experimental import pallas as pl
from jax.experimental.pallas import tpu as pltpu


_INV_SQRT2 = 1.0 / math.sqrt(2.0)


def _gelu_exact(x):
    # Matches torch.nn.GELU() default (exact erf formulation).
    # TODO(synk): optionally switch to the tanh approximation (EUP slot) if
    # profiles show the VALU erf polynomial saturating at small E / bf16.
    return 0.5 * x * (1.0 + jax.lax.erf(x * _INV_SQRT2))


def _round_up(x, m):
    return ((x + m - 1) // m) * m


def _tpu_budget():
    """Best-effort (vmem_capacity_bytes, tensorcores_per_chip)."""
    vmem_cap = 64 * 1024 * 1024
    cores = 1
    try:
        info = pltpu.get_tpu_info()
        vmem_cap = int(getattr(info, "vmem_capacity_bytes", vmem_cap))
        for name in ("num_cores", "num_tensorcores", "tensorcores_per_chip",
                     "cores_per_chip"):
            v = getattr(info, name, None)
            if v:
                cores = int(v)
                break
        else:
            # Heuristic: only v7x reports <= 64 MiB per-TC VMEM and has 2 TCs.
            cores = 2 if vmem_cap <= 64 * 1024 * 1024 else 1
    except Exception:
        pass
    return vmem_cap, cores


def _mlp_kernel(x_ref, w1_ref, b1_ref, w2_ref, b2_ref, alpha_ref, beta_ref,
                o_ref, *maybe_acc, tk, num_k):
    """One (token-tile i, hidden-chunk k) grid step.

    x_ref:  (TM, E)   token tile
    w1_ref: (E, TK)   chunk of W1 columns
    b1_ref: (1, MP)   full b1, VMEM-resident (sliced in-kernel)
    w2_ref: (TK, E)   chunk of W2 rows
    o_ref:  (TM, E)   output tile, resident across the k axis

    If `maybe_acc` is non-empty it is an f32 scratch accumulator (non-f32
    output dtypes); otherwise o_ref itself (f32) is the accumulator, saving
    TM*E*4 bytes of VMEM.
    """
    acc_ref = maybe_acc[0] if maybe_acc else o_ref
    k = pl.program_id(1)

    @pl.when(k == 0)
    def _():
        acc_ref[...] = jnp.zeros_like(acc_ref)

    # Linear 1 on this hidden chunk (MXU, f32 accumulation) + bias + exact GELU.
    h = jnp.dot(x_ref[...], w1_ref[...], preferred_element_type=jnp.float32)
    if num_k == 1:
        b1_chunk = b1_ref[...]
    else:
        # The wrapper guarantees tk % 128 == 0 whenever num_k > 1.
        b1_chunk = b1_ref[:, pl.ds(pl.multiple_of(k * tk, 128), tk)]
    h = _gelu_exact(h + b1_chunk.astype(jnp.float32))

    # Partial Linear 2: accumulate this hidden chunk's contribution.
    # The cast to the weight dtype is deliberate (bf16 weights -> bf16 MXU rate).
    acc_ref[...] += jnp.dot(h.astype(w2_ref.dtype), w2_ref[...],
                            preferred_element_type=jnp.float32)

    # Epilogue on the last hidden chunk: bias2 + TanhGate, then store the tile.
    @pl.when(k == num_k - 1)
    def _():
        y = acc_ref[...] + b2_ref[...].astype(jnp.float32)
        out = (alpha_ref[...].astype(jnp.float32) * jnp.tanh(y)
               + beta_ref[...].astype(jnp.float32))
        o_ref[...] = out.astype(o_ref.dtype)


@functools.partial(jax.jit, static_argnames=("tile_rows", "tile_hidden"))
def mlp_block(x, w1, b1, w2, b2, alpha, beta, *, tile_rows=None, tile_hidden=None):
    """x: (B, S, E). Returns (B, S, E)."""
    B, S, E = x.shape
    M = w1.shape[1]
    N = B * S

    x_isz = x.dtype.itemsize
    w_isz = w1.dtype.itemsize
    out_isz = x_isz
    need_acc = x.dtype != jnp.float32

    vmem_cap, cores = _tpu_budget()
    budget = int(0.85 * vmem_cap)

    # Token tile: large (fills MXU rows; arithmetic intensity ~ tm flop per
    # weight byte, so bf16 weights get a bigger default), capped so that on a
    # 2-TC part (v7x) the parallel token axis feeds both cores.
    tm_target = tile_rows if tile_rows is not None else (1024 if w_isz <= 2 else 512)
    tm = _round_up(min(tm_target, _round_up(N, 8)), 8)
    if cores >= 2 and N > 8:
        tm = min(tm, _round_up(pl.cdiv(N, cores), 8))

    tk_target = tile_hidden if tile_hidden is not None else 512
    EL = _round_up(E, 128)

    def usage(tm_, tk_, mp_):
        s = 2 * tm_ * EL * x_isz                                # x tiles (dbl-buf)
        s += 2 * EL * tk_ * w_isz                               # W1 chunks
        s += 2 * tk_ * EL * w_isz                               # W2 chunks
        s += 2 * tm_ * EL * out_isz                             # out tiles
        s += 2 * 8 * _round_up(mp_, 128) * b1.dtype.itemsize    # resident b1
        s += 3 * 2 * 8 * EL * alpha.dtype.itemsize              # b2/alpha/beta
        if need_acc:
            s += tm_ * EL * 4                                   # f32 accumulator
        return s

    # Hidden-dim chunk: full M when small, otherwise a multiple of 128.
    # Shrink tk first (keeps MXU row fill and per-tile weight reuse), then tm.
    if M <= tk_target:
        tk = M
    else:
        tk = _round_up(tk_target, 128)
        while usage(tm, tk, _round_up(M, tk)) > budget and tk > 128:
            tk = max(128, tk // 2)
    while usage(tm, tk, _round_up(M, tk)) > budget and tm > 64:
        tm = max(64, _round_up(tm // 2, 8))

    MP = _round_up(M, tk)
    num_k = MP // tk

    if MP != M:
        # Zero-pad the hidden dim: gelu(0) = 0 and zero W2 rows contribute 0.
        w1 = jnp.pad(w1, ((0, 0), (0, MP - M)))
        b1 = jnp.pad(b1, ((0, MP - M),))
        w2 = jnp.pad(w2, ((0, MP - M), (0, 0)))

    x2d = x.reshape(N, E)
    b1_2d = b1.reshape(1, MP)
    b2_2d = b2.reshape(1, E)
    alpha_2d = alpha.reshape(1, E)
    beta_2d = beta.reshape(1, E)

    # Ragged last token tile is handled by Pallas: rows are independent and
    # out-of-bounds writes are masked, so no HBM pad/slice of activations.
    grid = (pl.cdiv(N, tm), num_k)

    vmem_use = usage(tm, tk, MP)
    vmem_limit = int(min(0.9 * vmem_cap, max(16 * 1024 * 1024,
                                             vmem_use + 2 * 1024 * 1024)))

    cost = pl.CostEstimate(
        flops=4 * N * E * M,
        transcendentals=N * M + N * E,                     # erf + tanh
        bytes_accessed=int(
            N * E * (x_isz + out_isz)
            + pl.cdiv(N, tm) * 2 * E * MP * w_isz          # weights per token tile
            + MP * b1.dtype.itemsize + 3 * E * alpha.dtype.itemsize),
    )

    kernel = functools.partial(_mlp_kernel, tk=tk, num_k=num_k)
    scratch = [] if not need_acc else [pltpu.VMEM((tm, E), jnp.float32)]

    in_specs = [
        pl.BlockSpec((tm, E), lambda i, k: (i, 0)),   # x tile
        pl.BlockSpec((E, tk), lambda i, k: (0, k)),   # W1 chunk
        pl.BlockSpec((1, MP), lambda i, k: (0, 0)),   # b1 (resident)
        pl.BlockSpec((tk, E), lambda i, k: (k, 0)),   # W2 chunk
        pl.BlockSpec((1, E), lambda i, k: (0, 0)),    # b2
        pl.BlockSpec((1, E), lambda i, k: (0, 0)),    # alpha
        pl.BlockSpec((1, E), lambda i, k: (0, 0)),    # beta
    ]
    # TODO(synk): if profiling shows exposed W1/W2 DMA after tk shrinks (v7x
    # tk=256 case), set pipeline_mode=pl.Buffered(3) on the two weight specs.

    out2d = pl.pallas_call(
        kernel,
        out_shape=jax.ShapeDtypeStruct((N, E), x.dtype),
        grid_spec=pltpu.PrefetchScalarGridSpec(
            num_scalar_prefetch=0,
            grid=grid,
            in_specs=in_specs,
            out_specs=pl.BlockSpec((tm, E), lambda i, k: (i, 0)),
            scratch_shapes=scratch,
        ),
        compiler_params=pltpu.CompilerParams(
            dimension_semantics=("parallel", "arbitrary"),
            vmem_limit_bytes=vmem_limit,
        ),
        cost_estimate=cost,
    )(x2d, w1, b1_2d, w2, b2_2d, alpha_2d, beta_2d)

    return out2d.reshape(B, S, E)


def init_params(key, embedding_dimension, mlp_dimension):
    """Deterministic synthetic init (shapes follow the PyTorch module)."""
    k1, k2, k3, k4 = jax.random.split(key, 4)
    E, M = embedding_dimension, mlp_dimension
    # Linear(E -> M): PyTorch weight is (M, E); we store the transpose (E, M).
    bound1 = 1.0 / math.sqrt(E)
    w1 = jax.random.uniform(k1, (E, M), jnp.float32, -bound1, bound1)
    b1 = jax.random.uniform(k2, (M,), jnp.float32, -bound1, bound1)
    # Linear(M -> E)
    bound2 = 1.0 / math.sqrt(M)
    w2 = jax.random.uniform(k3, (M, E), jnp.float32, -bound2, bound2)
    b2 = jax.random.uniform(k4, (E,), jnp.float32, -bound2, bound2)
    # TanhGate: alpha = ones(E), beta = zeros(E)
    alpha = jnp.ones((E,), jnp.float32)
    beta = jnp.zeros((E,), jnp.float32)
    return w1, b1, w2, b2, alpha, beta


def reference(x, w1, b1, w2, b2, alpha, beta):
    h = x @ w1 + b1
    h = _gelu_exact(h)
    y = h @ w2 + b2
    return alpha * jnp.tanh(y) + beta


if __name__ == "__main__":
    B, S, E, M = 2, 8, 32, 64
    key = jax.random.PRNGKey(0)
    kx, kp = jax.random.split(key)
    x = jax.random.normal(kx, (B, S, E), jnp.float32)
    params = init_params(kp, E, M)

    out = jax.block_until_ready(mlp_block(x, *params))
    ref = reference(x, *params)

    assert out.shape == (B, S, E)
    max_err = float(jnp.max(jnp.abs(out - ref)))
    assert jnp.allclose(out, ref, atol=1e-4, rtol=1e-4), max_err
    print("KERNEL_OK")
</pallas_src>

<mosaic_0001>
module attributes {stable_mosaic.version = 11 : i64} {
  func.func @_mlp_kernel(%arg0: i32, %arg1: i32, %arg2: memref<16x32xf32, #tpu.memory_space<vmem>>, %arg3: memref<32x64xf32, #tpu.memory_space<vmem>>, %arg4: memref<1x64xf32, #tpu.memory_space<vmem>>, %arg5: memref<64x32xf32, #tpu.memory_space<vmem>>, %arg6: memref<1x32xf32, #tpu.memory_space<vmem>>, %arg7: memref<1x32xf32, #tpu.memory_space<vmem>>, %arg8: memref<1x32xf32, #tpu.memory_space<vmem>>, %arg9: memref<16x32xf32, #tpu.memory_space<vmem>>) attributes {dimension_semantics = [#tpu.dimension_semantics<parallel>, #tpu.dimension_semantics<arbitrary>], iteration_bounds = array<i64: 1, 1>, scalar_prefetch = 0 : i64, scratch_operands = 0 : i64, tpu.core_type = #tpu.core_type<tc>, window_params = [{transform_indices = @transform_0, window_bounds = array<i64: 16, 32>}, {transform_indices = @transform_1, window_bounds = array<i64: 32, 64>}, {pipeline_mode = #tpu.pipeline_mode<synchronous>, transform_indices = @transform_2, window_bounds = array<i64: 1, 64>}, {transform_indices = @transform_3, window_bounds = array<i64: 64, 32>}, {pipeline_mode = #tpu.pipeline_mode<synchronous>, transform_indices = @transform_4, window_bounds = array<i64: 1, 32>}, {pipeline_mode = #tpu.pipeline_mode<synchronous>, transform_indices = @transform_5, window_bounds = array<i64: 1, 32>}, {pipeline_mode = #tpu.pipeline_mode<synchronous>, transform_indices = @transform_6, window_bounds = array<i64: 1, 32>}, {transform_indices = @transform_7, window_bounds = array<i64: 16, 32>}]} {
    %c0_i32 = arith.constant 0 : i32
    %0 = arith.cmpi eq, %arg1, %c0_i32 : i32
    %1 = arith.extui %0 : i1 to i32
    %c0_i32_0 = arith.constant 0 : i32
    %2 = arith.cmpi ne, %1, %c0_i32_0 : i32
    scf.if %2 {
      %cst_18 = arith.constant 0.000000e+00 : f32
      %25 = vector.broadcast %cst_18 : f32 to vector<16x32xf32>
      %c0_19 = arith.constant 0 : index
      %c0_20 = arith.constant 0 : index
      %26 = vector.load %arg9[%c0_19, %c0_20] : memref<16x32xf32, #tpu.memory_space<vmem>>, vector<16x32xf32>
      tpu.vector_store %arg9[%c0_19, %c0_20], %25 {strides = array<i32>} : memref<16x32xf32, #tpu.memory_space<vmem>>, vector<16x32xf32>,
    } else {
    }
    %c0 = arith.constant 0 : index
    %c0_1 = arith.constant 0 : index
    %3 = vector.load %arg2[%c0, %c0_1] : memref<16x32xf32, #tpu.memory_space<vmem>>, vector<16x32xf32>
    %c0_2 = arith.constant 0 : index
    %c0_3 = arith.constant 0 : index
    %4 = vector.load %arg3[%c0_2, %c0_3] : memref<32x64xf32, #tpu.memory_space<vmem>>, vector<32x64xf32>
    %cst = arith.constant dense<0.000000e+00> : vector<16x64xf32>
    %5 = tpu.matmul %3, %4, %cst {dimension_numbers = #tpu.dot_dimension_numbers<[1], [0], [0], [1], [0, 0, 1, 1], [], []>} : vector<16x32xf32>, vector<32x64xf32>, vector<16x64xf32> -> vector<16x64xf32>
    %c0_4 = arith.constant 0 : index
    %c0_5 = arith.constant 0 : index
    %6 = vector.load %arg4[%c0_4, %c0_5] : memref<1x64xf32, #tpu.memory_space<vmem>>, vector<1x64xf32>
    %7 = vector.broadcast %6 : vector<1x64xf32> to vector<16x64xf32>
    %8 = arith.addf %5, %7 : vector<16x64xf32>
    %cst_6 = arith.constant 5.000000e-01 : f32
    %9 = vector.broadcast %cst_6 : f32 to vector<16x64xf32>
    %10 = arith.mulf %9, %8 : vector<16x64xf32>
    %cst_7 = arith.constant 0.707106769 : f32
    %11 = vector.broadcast %cst_7 : f32 to vector<16x64xf32>
    %12 = arith.mulf %8, %11 : vector<16x64xf32>
    %13 = math.erf %12 : vector<16x64xf32>
    %cst_8 = arith.constant 1.000000e+00 : f32
    %14 = vector.broadcast %cst_8 : f32 to vector<16x64xf32>
    %15 = arith.addf %14, %13 : vector<16x64xf32>
    %16 = arith.mulf %10, %15 : vector<16x64xf32>
    %c0_9 = arith.constant 0 : index
    %c0_10 = arith.constant 0 : index
    %17 = vector.load %arg9[%c0_9, %c0_10] : memref<16x32xf32, #tpu.memory_space<vmem>>, vector<16x32xf32>
    %c0_11 = arith.constant 0 : index
    %c0_12 = arith.constant 0 : index
    %18 = vector.load %arg5[%c0_11, %c0_12] : memref<64x32xf32, #tpu.memory_space<vmem>>, vector<64x32xf32>
    %cst_13 = arith.constant dense<0.000000e+00> : vector<16x32xf32>
    %19 = tpu.matmul %16, %18, %cst_13 {dimension_numbers = #tpu.dot_dimension_numbers<[1], [0], [0], [1], [0, 0, 1, 1], [], []>} : vector<16x64xf32>, vector<64x32xf32>, vector<16x32xf32> -> vector<16x32xf32>
    %20 = arith.addf %17, %19 : vector<16x32xf32>
    %c0_14 = arith.constant 0 : index
    %c0_15 = arith.constant 0 : index
    %21 = vector.load %arg9[%c0_14, %c0_15] : memref<16x32xf32, #tpu.memory_space<vmem>>, vector<16x32xf32>
    tpu.vector_store %arg9[%c0_14, %c0_15], %20 {strides = array<i32>} : memref<16x32xf32, #tpu.memory_space<vmem>>, vector<16x32xf32>,
    %c0_i32_16 = arith.constant 0 : i32
    %22 = arith.cmpi eq, %arg1, %c0_i32_16 : i32
    %23 = arith.extui %22 : i1 to i32
    %c0_i32_17 = arith.constant 0 : i32
    %24 = arith.cmpi ne, %23, %c0_i32_17 : i32
    scf.if %24 {
      %c0_18 = arith.constant 0 : index
      %c0_19 = arith.constant 0 : index
      %25 = vector.load %arg9[%c0_18, %c0_19] : memref<16x32xf32, #tpu.memory_space<vmem>>, vector<16x32xf32>
      %c0_20 = arith.constant 0 : index
      %c0_21 = arith.constant 0 : index
      %26 = vector.load %arg6[%c0_20, %c0_21] : memref<1x32xf32, #tpu.memory_space<vmem>>, vector<1x32xf32>
      %27 = vector.broadcast %26 : vector<1x32xf32> to vector<16x32xf32>
      %28 = arith.addf %25, %27 : vector<16x32xf32>
      %c0_22 = arith.constant 0 : index
      %c0_23 = arith.constant 0 : index
      %29 = vector.load %arg7[%c0_22, %c0_23] : memref<1x32xf32, #tpu.memory_space<vmem>>, vector<1x32xf32>
      %30 = math.tanh %28 : vector<16x32xf32>
      %31 = vector.broadcast %29 : vector<1x32xf32> to vector<16x32xf32>
      %32 = arith.mulf %31, %30 : vector<16x32xf32>
      %c0_24 = arith.constant 0 : index
      %c0_25 = arith.constant 0 : index
      %33 = vector.load %arg8[%c0_24, %c0_25] : memref<1x32xf32, #tpu.memory_space<vmem>>, vector<1x32xf32>
      %34 = vector.broadcast %33 : vector<1x32xf32> to vector<16x32xf32>
      %35 = arith.addf %32, %34 : vector<16x32xf32>
      %c0_26 = arith.constant 0 : index
      %c0_27 = arith.constant 0 : index
      %36 = vector.load %arg9[%c0_26, %c0_27] : memref<16x32xf32, #tpu.memory_space<vmem>>, vector<16x32xf32>
      tpu.vector_store %arg9[%c0_26, %c0_27], %35 {strides = array<i32>} : memref<16x32xf32, #tpu.memory_space<vmem>>, vector<16x32xf32>,
    } else {
    }
    return
  }
  func.func @transform_0(%arg0: i32, %arg1: i32) -> (i32, i32) {
    %c0_i32 = arith.constant 0 : i32
    %c0_i32_0 = arith.constant 0 : i32
    return %arg0, %c0_i32 : i32, i32
  }
  func.func @transform_1(%arg0: i32, %arg1: i32) -> (i32, i32) {
    %c0_i32 = arith.constant 0 : i32
    %c0_i32_0 = arith.constant 0 : i32
    return %c0_i32, %arg1 : i32, i32
  }
  func.func @transform_2(%arg0: i32, %arg1: i32) -> (i32, i32) {
    %c0_i32 = arith.constant 0 : i32
    %c0_i32_0 = arith.constant 0 : i32
    %c0_i32_1 = arith.constant 0 : i32
    return %c0_i32, %c0_i32_0 : i32, i32
  }
  func.func @transform_3(%arg0: i32, %arg1: i32) -> (i32, i32) {
    %c0_i32 = arith.constant 0 : i32
    %c0_i32_0 = arith.constant 0 : i32
    return %arg1, %c0_i32 : i32, i32
  }
  func.func @transform_4(%arg0: i32, %arg1: i32) -> (i32, i32) {
    %c0_i32 = arith.constant 0 : i32
    %c0_i32_0 = arith.constant 0 : i32
    %c0_i32_1 = arith.constant 0 : i32
    return %c0_i32, %c0_i32_0 : i32, i32
  }
  func.func @transform_5(%arg0: i32, %arg1: i32) -> (i32, i32) {
    %c0_i32 = arith.constant 0 : i32
    %c0_i32_0 = arith.constant 0 : i32
    %c0_i32_1 = arith.constant 0 : i32
    return %c0_i32, %c0_i32_0 : i32, i32
  }
  func.func @transform_6(%arg0: i32, %arg1: i32) -> (i32, i32) {
    %c0_i32 = arith.constant 0 : i32
    %c0_i32_0 = arith.constant 0 : i32
    %c0_i32_1 = arith.constant 0 : i32
    return %c0_i32, %c0_i32_0 : i32, i32
  }
  func.func @transform_7(%arg0: i32, %arg1: i32) -> (i32, i32) {
    %c0_i32 = arith.constant 0 : i32
    %c0_i32_0 = arith.constant 0 : i32
    return %arg0, %c0_i32 : i32, i32
  }
}

</mosaic_0001>

<llo_original>
// kernel: mlp_block.1
$region0: #{mlp_block.1}
  #allocation0 [shape = 'u32[]', space=smem, size = 0x4, offset = 0x4, fixed_abs, tag = 'smem constant byte address 0x4 - core index']
  #allocation1 [shape = 'u32[72,128]{1,0:T(1,128)}', space=vmem, size = 0x9000, scoped, tag = 'internal scratch']
  %s0 = inlined_call_operand.vmem [shape: f32[16,32], index: 0, kind: input, shape index: {}]
  %s1 = inlined_call_operand.vmem [shape: f32[32,64], index: 1, kind: input, shape index: {}]
  %s2 = inlined_call_operand.vmem [shape: f32[1,64], index: 2, kind: input, shape index: {}]
  %s3 = inlined_call_operand.vmem [shape: f32[64,32], index: 3, kind: input, shape index: {}]
  %s4 = inlined_call_operand.vmem [shape: f32[1,32], index: 4, kind: input, shape index: {}]
  %s5 = inlined_call_operand.vmem [shape: f32[1,32], index: 5, kind: input, shape index: {}]
  %s6 = inlined_call_operand.vmem [shape: f32[1,32], index: 6, kind: input, shape index: {}]
  %s7 = inlined_call_operand.hbm [shape: f32[16,32], index: 7, kind: output, shape index: {}]
  %s8 = sld [smem:[#allocation0]]
  $region46: #{mlp_block.1} parent=0
    _
  %s10 = ssub.s32 1, %s8
  %s11 = scalar_select 0, %s10, %s8
  $region1: #{mlp_block.1} parent=0
    #allocation2 [shape = 'u8[8192]{0}', space=vmem, size = 0x2000, scoped, tag = 'output window, operand 0, single buffered']
    #allocation3 [shape = 's32[1]{0}', space=sflag, size = 0x4, scoped, tag = 'scoped memory for mlp_block.1']
    %12 = vsyncpa [#allocation3], 0
    // Predicated region
    $region2: #{mlp_block.1} parent=1 // pred_check
      _
    $region3: #{mlp_block.1} parent=1 // pred_check_branch
      %14 = sbr.rel (0) target = $region5
    $region4: #{mlp_block.1} parent=1 // pred_region
      _
    $region5: #{mlp_block.1} parent=1 // pred_fallthru
      _
    // Predicated region
    $region6: #{mlp_block.1} parent=1 // pred_check
      _
    $region7: #{mlp_block.1} parent=1 // pred_check_branch
      %16 = sbr.rel (0) target = $region9
    $region8: #{mlp_block.1} parent=1 // pred_region
      _
    $region9: #{mlp_block.1} parent=1 // pred_fallthru
      _
    // Predicated region
    $region10: #{mlp_block.1} parent=1 // pred_check
      _
    $region11: #{mlp_block.1} parent=1 // pred_check_branch
      %18 = sbr.rel (0) target = $region13
    $region12: #{mlp_block.1} parent=1 // pred_region
      _
    $region13: #{mlp_block.1} parent=1 // pred_fallthru
      _
    // Predicated region
    $region14: #{mlp_block.1} parent=1 // pred_check
      _
    $region15: #{mlp_block.1} parent=1 // pred_check_branch
      %20 = sbr.rel (0) target = $region17
    $region16: #{mlp_block.1} parent=1 // pred_region
      _
    $region17: #{mlp_block.1} parent=1 // pred_fallthru
      _
    // Predicated region
    $region18: #{mlp_block.1} parent=1 // pred_check
      _
    $region19: #{mlp_block.1} parent=1 // pred_check_branch
      %22 = sbr.rel (0) target = $region21
    $region20: #{mlp_block.1} parent=1 // pred_region
      _
    $region21: #{mlp_block.1} parent=1 // pred_fallthru
      _
    // Predicated region
    $region22: #{mlp_block.1} parent=1 // pred_check
      _
    $region23: #{mlp_block.1} parent=1 // pred_check_branch
      %24 = sbr.rel (0) target = $region25
    $region24: #{mlp_block.1} parent=1 // pred_region
      _
    $region25: #{mlp_block.1} parent=1 // pred_fallthru
      _
    // Predicated region
    $region26: #{mlp_block.1} parent=1 // pred_check
      _
    $region27: #{mlp_block.1} parent=1 // pred_check_branch
      %26 = sbr.rel (0) target = $region29
    $region28: #{mlp_block.1} parent=1 // pred_region
      _
    $region29: #{mlp_block.1} parent=1 // pred_fallthru
      _
    %p27 = scmp.eq.s32.totalorder 0, 0
    // Predicated region
    $region30: #{mlp_block.1} parent=1 // pred_check
      %p28 = pneg %p27
    $region31: #{mlp_block.1} parent=1 // pred_check_branch
      %30 = sbr.rel (%p28) target = $region33
    $region32: #{mlp_block.1} parent=1 // pred_region
      %vm31 = vcmask 261120
      %32 = vst.msk [vmem:[#allocation2] sm:$0xff] %vm31, 0.0
      %33 = vst.msk [vmem:[#allocation2 + $0x8] sm:$0xff] %vm31, 0.0
    $region33: #{mlp_block.1} parent=1 // pred_fallthru
      _
    %v34 = vld [vmem:[%s0] sm:$0xff]
    %v35 = vld [vmem:[%s0 + $0x8] sm:$0xff]
    %v36 = vld [vmem:[%s1] sm:$0xff]
    %v37 = vld [vmem:[%s1 + $0x8] sm:$0xff]
    %v38 = vld [vmem:[%s1 + $0x10] sm:$0xff]
    %v39 = vld [vmem:[%s1 + $0x18] sm:$0xff]
    %v40 = vld [vmem:[%s2] sm:$0x1]
    %v42 = vperm.slane %v40, 0
    %vm44 = vcmask 261120
    %v46 = vsel %vm44, %v34, 0
    %v49 = vsel %vm44, %v35, 0
    %51 = vmatpush.msra.mxu0 0.0
    %52 = vmatpush.msra.mxu0 0.0
    %53 = vmatpush.msra.mxu0 0.0
    %54 = vmatpush.msra.mxu0 0.0
    %55 = vmatpush.msra.mxu0 0.0
    %56 = vmatpush.msra.mxu0 0.0
    %57 = vmatpush.msra.mxu0 0.0
    %58 = vmatpush.msra.mxu0 0.0
    %59 = vmatpush.msra.mxu0 0.0
    %60 = vmatpush.msra.mxu0 0.0
    %61 = vmatpush.msra.mxu0 0.0
    %62 = vmatpush.msra.mxu0 0.0
    %63 = vmatpush.msra.mxu0 %v39
    %64 = vmatpush.msra.mxu0 %v38
    %65 = vmatpush.msra.mxu0 %v37
    %66 = vmatpush.msra.mxu0 %v36
    %67 = vmatmul.f32.gmra.mxu0 %v46
    %v68 = vpop.f32.mrf.mxu0
    %v69 = vadd.f32 %v42, %v68
    %70 = vmatmul.f32.gmra.mxu0 %v49
    %v71 = vpop.f32.mrf.mxu0
    %v72 = vadd.f32 %v42, %v71
    %73 = vdwg.mxu0
    %v74 = vmul.f32 %v69, 0.5
    %v75 = vmul.f32 %v72, 0.5
    %v76 = vmul.f32 %v69, 0.70710677
    %v77 = vmul.f32 %v72, 0.70710677
    %v78 = vmul.f32 %v76, %v76
    %v79 = vmin.f32 16.0, %v78
    %v80 = vmul.f32 %v79, 2.1237322e-06
    %v81 = vadd.f32 %v80, 0.00028619796
    %v82 = vmul.f32 %v79, %v81
    %v83 = vadd.f32 %v82, 0.0036580483
    %v84 = vmul.f32 %v79, %v83
    %v85 = vadd.f32 %v84, 0.05243302
    %v86 = vmul.f32 %v79, %v85
    %v87 = vadd.f32 %v86, 0.18741608
    %v88 = vmul.f32 %v79, %v87
    %v89 = vadd.f32 %v88, 1.1283791
    %v90 = vmul.f32 %v76, %v89
    %v91 = vmul.f32 %v79, 3.8918573e-05
    %v92 = vadd.f32 %v91, 0.001143296
    %v93 = vmul.f32 %v79, %v92
    %v94 = vadd.f32 %v93, 0.014752088
    %v95 = vmul.f32 %v79, %v94
    %v96 = vadd.f32 %v95, 0.112945676
    %v97 = vmul.f32 %v79, %v96
    %v98 = vadd.f32 %v97, 0.4994258
    %v99 = vmul.f32 %v79, %v98
    %v100 = vadd.f32 %v99, 1.0
    %v101 = vrcp.pop %v100
    %v102 = vmul.f32 %v100, %v101
    %v103 = vsub.f32 1.0, %v102
    %v104 = vmul.f32 %v101, %v103
    %v105 = vadd.f32 %v101, %v104
    %vm106 = vweird.f32 %v100
    %vm107 = vweird.f32 %v101
    %vm108 = vmor %vm106, %vm107
    %v109 = vsel %vm108, %v101, %v105
    %v110 = vand.u32 2147483647, %v100
    %vm111 = vcmp.eq.f32.partialorder %v110, 8.507059e+37
    %v112 = vand.u32 %v100, 2147483648
    %v113 = vor.u32 1.1754944e-38, %v112
    %v114 = vsel %vm111, %v113, %v109
    %v115 = vmul.f32 %v90, %v114
    %v116 = vmin.f32 %v115, 1.0
    %v117 = vmax.f32 %v116, -1.0
    %v118 = vmul.f32 %v77, %v77
    %v119 = vmin.f32 16.0, %v118
    %v120 = vmul.f32 %v119, 2.1237322e-06
    %v121 = vadd.f32 %v120, 0.00028619796
    %v122 = vmul.f32 %v119, %v121
    %v123 = vadd.f32 %v122, 0.0036580483
    %v124 = vmul.f32 %v119, %v123
    %v125 = vadd.f32 %v124, 0.05243302
    %v126 = vmul.f32 %v119, %v125
    %v127 = vadd.f32 %v126, 0.18741608
    %v128 = vmul.f32 %v119, %v127
    %v129 = vadd.f32 %v128, 1.1283791
    %v130 = vmul.f32 %v77, %v129
    %v131 = vmul.f32 %v119, 3.8918573e-05
    %v132 = vadd.f32 %v131, 0.001143296
    %v133 = vmul.f32 %v119, %v132
    %v134 = vadd.f32 %v133, 0.014752088
    %v135 = vmul.f32 %v119, %v134
    %v136 = vadd.f32 %v135, 0.112945676
    %v137 = vmul.f32 %v119, %v136
    %v138 = vadd.f32 %v137, 0.4994258
    %v139 = vmul.f32 %v119, %v138
    %v140 = vadd.f32 %v139, 1.0
    %v141 = vrcp.pop %v140
    %v142 = vmul.f32 %v140, %v141
    %v143 = vsub.f32 1.0, %v142
    %v144 = vmul.f32 %v141, %v143
    %v145 = vadd.f32 %v141, %v144
    %vm146 = vweird.f32 %v140
    %vm147 = vweird.f32 %v141
    %vm148 = vmor %vm146, %vm147
    %v149 = vsel %vm148, %v141, %v145
    %v150 = vand.u32 2147483647, %v140
    %vm151 = vcmp.eq.f32.partialorder %v150, 8.507059e+37
    %v152 = vand.u32 %v140, 2147483648
    %v153 = vor.u32 1.1754944e-38, %v152
    %v154 = vsel %vm151, %v153, %v149
    %v155 = vmul.f32 %v130, %v154
    %v156 = vmin.f32 %v155, 1.0
    %v157 = vmax.f32 %v156, -1.0
    %v158 = vadd.f32 %v117, 1.0
    %v159 = vadd.f32 %v157, 1.0
    %v160 = vmul.f32 %v74, %v158
    %v161 = vmul.f32 %v75, %v159
    %v162 = vld [vmem:[#allocation2] sm:$0xff]
    %v163 = vld [vmem:[#allocation2 + $0x8] sm:$0xff]
    %v164 = vld [vmem:[%s3] sm:$0xff]
    %v165 = vld [vmem:[%s3 + $0x8] sm:$0xff]
    %v166 = vld [vmem:[%s3 + $0x10] sm:$0xff]
    %v167 = vld [vmem:[%s3 + $0x18] sm:$0xff]
    %v168 = vld [vmem:[%s3 + $0x20] sm:$0xff]
    %v169 = vld [vmem:[%s3 + $0x28] sm:$0xff]
    %v170 = vld [vmem:[%s3 + $0x30] sm:$0xff]
    %v171 = vld [vmem:[%s3 + $0x38] sm:$0xff]
    %vm172 = vcmask 523264
    %v174 = vsel %vm172, %v160, 0
    %v177 = vsel %vm172, %v161, 0
    %179 = vmatpush.msra.mxu0 0.0
    %180 = vmatpush.msra.mxu0 0.0
    %181 = vmatpush.msra.mxu0 0.0
    %182 = vmatpush.msra.mxu0 0.0
    %183 = vmatpush.msra.mxu0 0.0
    %184 = vmatpush.msra.mxu0 0.0
    %185 = vmatpush.msra.mxu0 0.0
    %186 = vmatpush.msra.mxu0 0.0
    %187 = vmatpush.msra.mxu0 %v171
    %188 = vmatpush.msra.mxu0 %v170
    %189 = vmatpush.msra.mxu0 %v169
    %190 = vmatpush.msra.mxu0 %v168
    %191 = vmatpush.msra.mxu0 %v167
    %192 = vmatpush.msra.mxu0 %v166
    %193 = vmatpush.msra.mxu0 %v165
    %194 = vmatpush.msra.mxu0 %v164
    %195 = vmatmul.f32.gmra.mxu0 %v174
    %v196 = vpop.f32.mrf.mxu0
    %v197 = vadd.f32 0.0, %v196
    %198 = vmatmul.f32.gmra.mxu0 %v177
    %v199 = vpop.f32.mrf.mxu0
    %v200 = vadd.f32 0.0, %v199
    %201 = vdwg.mxu0
    %v202 = vadd.f32 %v162, %v197
    %v203 = vadd.f32 %v163, %v200
    %204 = vst.msk [vmem:[#allocation2] sm:$0xff] %vm44, %v202
    %205 = vst.msk [vmem:[#allocation2 + $0x8] sm:$0xff] %vm44, %v203
    // Predicated region
    $region34: #{mlp_block.1} parent=1 // pred_check
      %p206 = pneg %p27
    $region35: #{mlp_block.1} parent=1 // pred_check_branch
      %208 = sbr.rel (%p206) target = $region37
    $region36: #{mlp_block.1} parent=1 // pred_region
      %v209 = vld [vmem:[#allocation2] sm:$0xff]
      %v210 = vld [vmem:[#allocation2 + $0x8] sm:$0xff]
      %v211 = vld [vmem:[%s4] sm:$0x1]
      %v213 = vperm.slane %v211, 0
      %v215 = vadd.f32 %v209, %v213
      %v216 = vadd.f32 %v210, %v213
      %v217 = vld [vmem:[%s5] sm:$0x1]
      %v218 = vtanh.pop %v215
      %v219 = vtanh.pop %v216
      %v221 = vperm.slane %v217, 0
      %v223 = vmul.f32 %v221, %v218
      %v224 = vmul.f32 %v221, %v219
      %v225 = vld [vmem:[%s6] sm:$0x1]
      %v227 = vperm.slane %v225, 0
      %v229 = vadd.f32 %v223, %v227
      %v230 = vadd.f32 %v224, %v227
      %231 = vst.msk [vmem:[#allocation2] sm:$0xff] %vm44, %v229
      %232 = vst.msk [vmem:[#allocation2 + $0x8] sm:$0xff] %vm44, %v230
    $region37: #{mlp_block.1} parent=1 // pred_fallthru
      _
    // Predicated region
    $region38: #{mlp_block.1} parent=1 // pred_check
      _
    $region39: #{mlp_block.1} parent=1 // pred_check_branch
      %234 = sbr.rel (0) target = $region41
    $region40: #{mlp_block.1} parent=1 // pred_region
      %236 = vsyncadd [#allocation3], 0
      %s237 = sshll.u32 [#allocation2], 4
      %s238 = int_to_ptr.vmem [resolvable:$true] %s237
      %s239 = sshll.u32 %s7, 4
      %s240 = int_to_ptr.hbm [resolvable:$true] %s239
      %245 = dma.vmem_to_hbm [thread:$0]  %s238, 256, %s240, [#allocation3], 128, 128, 8
    $region41: #{mlp_block.1} parent=1 // pred_fallthru
      _
    // Predicated region
    $region42: #{mlp_block.1} parent=1 // pred_check
      _
    $region43: #{mlp_block.1} parent=1 // pred_check_branch
      %247 = sbr.rel (0) target = $region45
    $region44: #{mlp_block.1} parent=1 // pred_region
      %249 = dma.done [#allocation3], 256
    $region45: #{mlp_block.1} parent=1 // pred_fallthru
      _
    %250 = vsyncpa [#allocation3], 1

</llo_original>
